<compile_context>
chip_gen: v6e
topology: v6e:2x2x1
jax: 0.10.0
libtpu: 0.0.40
codegen_flags: <defaults>
</compile_context>

<pallas_src>
import numpy as np
import jax
import jax.numpy as jnp
from jax.experimental import pallas as pl
from jax.experimental.pallas import tpu as pltpu


# ----------------------------------------------------------------------------
# Kernel
# ----------------------------------------------------------------------------
def rope_kernel(x_ref, cos_ref, sin_ref, o_ref):
    """x_ref/o_ref: (bb, S_TILE, d_k); cos_ref/sin_ref: (S_TILE, d_k) f32.

    out[..., 2k]   = cos_k * x[..., 2k]   - sin_k * x[..., 2k+1]
    out[..., 2k+1] = sin_k * x[..., 2k]   + cos_k * x[..., 2k+1]

    realized as:
        x_next = roll(x, d_k-1)  -> x[..., (i+1) % d_k]   (right neighbor)
        x_prev = roll(x, 1)      -> x[..., (i-1) % d_k]   (left neighbor)
        x_swap = where(lane even, x_next, x_prev)
        out    = x * cos + x_swap * sin_signed
    with sin_signed[.., 2k] = -sin, sin_signed[.., 2k+1] = +sin.
    Wrap-around lanes are never selected by the parity mask, so no masking of
    the rolled values is needed.
    """
    x = x_ref[...].astype(jnp.float32)              # (bb, St, d_k)
    d_k = x.shape[-1]

    # Lane rotations on the XLU (free vector-extended slots; no MXU, no
    # permutation matrix in VMEM).
    x_next = pltpu.roll(x, d_k - 1, axis=2)         # x[..., (i+1) % d_k]
    x_prev = pltpu.roll(x, 1, axis=2)               # x[..., (i-1) % d_k]

    # Lane-parity select of the neighbor (constant mask, folded by the compiler).
    parity = jax.lax.broadcasted_iota(jnp.int32, x.shape, 2) & 1
    x_swap = jnp.where(parity == 0, x_next, x_prev)

    cos = cos_ref[...][None, :, :]                  # broadcast over batch dim
    sin = sin_ref[...][None, :, :]

    o_ref[...] = (x * cos + x_swap * sin).astype(o_ref.dtype)


# ----------------------------------------------------------------------------
# Host-side table construction (the module's precomputed buffer, re-laid-out)
# ----------------------------------------------------------------------------
def build_rope_tables(theta, d_k, max_seq_len):
    """Returns (cos_full, sin_signed), each (max_seq_len, d_k) f32.

    cos_full  [i, 2k] = cos_full[i, 2k+1] = cos(theta_{i,k})
    sin_signed[i, 2k] = -sin(theta_{i,k}),  sin_signed[i, 2k+1] = +sin(theta_{i,k})
    """
    assert d_k % 2 == 0
    d2 = d_k // 2
    pos = np.arange(max_seq_len, dtype=np.float64)[:, None]              # (L, 1)
    inv_freq = 1.0 / theta ** (2.0 * np.arange(d2, dtype=np.float64) / d_k)
    ang = pos * inv_freq[None, :]                                        # (L, d2)
    cos = np.repeat(np.cos(ang), 2, axis=1)                              # (L, d_k)
    sin = np.sin(ang)
    sin_signed = np.empty((max_seq_len, d_k), dtype=np.float64)
    sin_signed[:, 0::2] = -sin
    sin_signed[:, 1::2] = sin
    return (jnp.asarray(cos, jnp.float32),
            jnp.asarray(sin_signed, jnp.float32))


# ----------------------------------------------------------------------------
# Wrapper
# ----------------------------------------------------------------------------
def rotary_positional_embedding(x, cos_tbl, sin_tbl, token_positions=None, *,
                                seq_block=512, batch_block=4,
                                vmem_limit_bytes=None):
    """x: (..., S, d_k) float.  token_positions: None or (S,) int shared
    across the batch.  cos_tbl/sin_tbl: (max_seq_len, d_k) f32 from
    build_rope_tables()."""
    # TODO(synk): per-batch (multi-dim) token_positions would need an in-kernel
    #             scalar-prefetch row gather of the tables; only a shared 1-D
    #             position vector (or the arange default) is supported here.
    # TODO(synk): d_k == 64 could be made lane-dense by folding pairs of heads
    #             into the 128-lane dim; d_k != 128 currently uses masked stores.
    orig_shape = x.shape
    S, d_k = orig_shape[-2], orig_shape[-1]
    x3 = x.reshape(-1, S, d_k)
    B = x3.shape[0]

    if token_positions is None:
        # Default arange(S): slice table rows directly via the BlockSpec
        # index_map — no host-side gather, no extra HBM round-trip.
        cos, sin = cos_tbl, sin_tbl
    else:
        # Shared custom positions: one host-side gather of the two tables.
        cos = cos_tbl[token_positions]          # (S, d_k)
        sin = sin_tbl[token_positions]          # (S, d_k)

    st = min(seq_block, S)
    bb = min(batch_block, B)
    # seq outer, batch inner -> table block index constant across the inner
    # axis => table DMA issued once per seq tile (elision).
    grid = (pl.cdiv(S, st), pl.cdiv(B, bb))

    out3 = pl.pallas_call(
        rope_kernel,
        out_shape=jax.ShapeDtypeStruct((B, S, d_k), x.dtype),
        grid_spec=pltpu.PrefetchScalarGridSpec(
            num_scalar_prefetch=0,
            grid=grid,
            in_specs=[
                pl.BlockSpec((bb, st, d_k), lambda s, b: (b, s, 0)),
                pl.BlockSpec((st, d_k), lambda s, b: (s, 0)),
                pl.BlockSpec((st, d_k), lambda s, b: (s, 0)),
            ],
            out_specs=pl.BlockSpec((bb, st, d_k), lambda s, b: (b, s, 0)),
        ),
        compiler_params=pltpu.CompilerParams(
            dimension_semantics=("parallel", "parallel"),
            vmem_limit_bytes=vmem_limit_bytes),
    )(x3, cos, sin)
    return out3.reshape(orig_shape)


# ----------------------------------------------------------------------------
# Pure-JAX reference mirroring the PyTorch module (block-diag 2x2 rotations)
# ----------------------------------------------------------------------------
def reference_rope(x, theta, d_k, max_seq_len, token_positions=None):
    S = x.shape[-2]
    if token_positions is None:
        token_positions = jnp.arange(S, dtype=jnp.int32)
    d2 = d_k // 2
    pos = np.arange(max_seq_len, dtype=np.float64)[:, None]
    inv_freq = 1.0 / theta ** (2.0 * np.arange(d2, dtype=np.float64) / d_k)
    ang = pos * inv_freq[None, :]                                        # (L, d2)
    cos = jnp.asarray(np.cos(ang), jnp.float32)[token_positions]         # (S, d2)
    sin = jnp.asarray(np.sin(ang), jnp.float32)[token_positions]         # (S, d2)

    xf = x.astype(jnp.float32)
    xe = xf[..., 0::2]                                                   # (..., S, d2)
    xo = xf[..., 1::2]
    oe = cos * xe - sin * xo
    oo = sin * xe + cos * xo
    return jnp.stack([oe, oo], axis=-1).reshape(x.shape)


# ----------------------------------------------------------------------------
if __name__ == "__main__":
    theta = 10000.0
    d_k = 128
    key = jax.random.PRNGKey(0)

    # --- Test 1: small shapes as in the module (batch=2, seq=8, d_k=128),
    #     default arange(seq) positions, max_seq_len > seq.
    B, S, max_seq_len = 2, 8, 16
    k1, k2, k3 = jax.random.split(key, 3)
    x = jax.random.normal(k1, (B, S, d_k), dtype=jnp.float32)
    cos_tbl, sin_tbl = build_rope_tables(theta, d_k, max_seq_len)
    out = jax.block_until_ready(
        rotary_positional_embedding(x, cos_tbl, sin_tbl))
    ref = reference_rope(x, theta, d_k, max_seq_len)
    assert out.shape == (B, S, d_k)
    np.testing.assert_allclose(np.asarray(out), np.asarray(ref),
                               rtol=1e-6, atol=1e-6)

    # --- Test 2: explicit (shared) token positions.
    positions = jnp.array([3, 1, 4, 1, 5, 9, 2, 6], dtype=jnp.int32)
    out2 = jax.block_until_ready(
        rotary_positional_embedding(x, cos_tbl, sin_tbl,
                                    token_positions=positions))
    ref2 = reference_rope(x, theta, d_k, max_seq_len,
                          token_positions=positions)
    np.testing.assert_allclose(np.asarray(out2), np.asarray(ref2),
                               rtol=1e-6, atol=1e-6)

    # --- Test 3: multi-step 2-D grid (seq-axis tiling + batch blocking),
    #     ragged batch / ragged last seq tile, f32.
    B3, S3, max_len3 = 3, 40, 64
    x3 = jax.random.normal(k2, (B3, S3, d_k), dtype=jnp.float32)
    cos3, sin3 = build_rope_tables(theta, d_k, max_len3)
    out3 = jax.block_until_ready(
        rotary_positional_embedding(x3, cos3, sin3,
                                    seq_block=16, batch_block=2))
    ref3 = reference_rope(x3, theta, d_k, max_len3)
    np.testing.assert_allclose(np.asarray(out3), np.asarray(ref3),
                               rtol=1e-6, atol=1e-6)

    # --- Test 4: bf16 I/O (f32 math inside), multi-tile grid.
    B4, S4, max_len4 = 4, 256, 256
    x4 = jax.random.normal(k3, (B4, S4, d_k), dtype=jnp.float32).astype(jnp.bfloat16)
    cos4, sin4 = build_rope_tables(theta, d_k, max_len4)
    out4 = jax.block_until_ready(
        rotary_positional_embedding(x4, cos4, sin4,
                                    seq_block=128, batch_block=2))
    ref4 = reference_rope(x4, theta, d_k, max_len4)
    np.testing.assert_allclose(np.asarray(out4, dtype=np.float32),
                               np.asarray(ref4), rtol=2e-2, atol=2e-2)

    print("KERNEL_OK")
</pallas_src>

<mosaic_0001>
module attributes {stable_mosaic.version = 11 : i64} {
  func.func @rope_kernel(%arg0: i32, %arg1: i32, %arg2: memref<2x8x128xf32, #tpu.memory_space<vmem>>, %arg3: memref<8x128xf32, #tpu.memory_space<vmem>>, %arg4: memref<8x128xf32, #tpu.memory_space<vmem>>, %arg5: memref<2x8x128xf32, #tpu.memory_space<vmem>>) attributes {dimension_semantics = [#tpu.dimension_semantics<parallel>, #tpu.dimension_semantics<parallel>], iteration_bounds = array<i64: 1, 1>, scalar_prefetch = 0 : i64, scratch_operands = 0 : i64, tpu.core_type = #tpu.core_type<tc>, window_params = [{transform_indices = @transform_0, window_bounds = array<i64: 2, 8, 128>}, {transform_indices = @transform_1, window_bounds = array<i64: 8, 128>}, {transform_indices = @transform_2, window_bounds = array<i64: 8, 128>}, {transform_indices = @transform_3, window_bounds = array<i64: 2, 8, 128>}]} {
    %c0 = arith.constant 0 : index
    %c0_0 = arith.constant 0 : index
    %c0_1 = arith.constant 0 : index
    %0 = vector.load %arg2[%c0, %c0_0, %c0_1] : memref<2x8x128xf32, #tpu.memory_space<vmem>>, vector<2x8x128xf32>
    %c127_i32 = arith.constant 127 : i32
    %1 = tpu.dynamic_rotate %0 by %c127_i32 dim 2 : vector<2x8x128xf32>, i32 -> vector<2x8x128xf32>
    %c1_i32 = arith.constant 1 : i32
    %2 = tpu.dynamic_rotate %0 by %c1_i32 dim 2 : vector<2x8x128xf32>, i32 -> vector<2x8x128xf32>
    %3 = tpu.iota {dimensions = array<i32: 2>} : vector<2x8x128xi32>
    %c1_i32_2 = arith.constant 1 : i32
    %4 = vector.broadcast %c1_i32_2 : i32 to vector<2x8x128xi32>
    %5 = arith.andi %3, %4 : vector<2x8x128xi32>
    %c0_i32 = arith.constant 0 : i32
    %6 = vector.broadcast %c0_i32 : i32 to vector<2x8x128xi32>
    %7 = arith.cmpi eq, %5, %6 : vector<2x8x128xi32>
    %8 = arith.select %7, %1, %2 : vector<2x8x128xi1>, vector<2x8x128xf32>
    %c0_3 = arith.constant 0 : index
    %c0_4 = arith.constant 0 : index
    %9 = vector.load %arg3[%c0_3, %c0_4] : memref<8x128xf32, #tpu.memory_space<vmem>>, vector<8x128xf32>
    %10 = vector.shape_cast %9 : vector<8x128xf32> to vector<1x8x128xf32>
    %c0_5 = arith.constant 0 : index
    %c0_6 = arith.constant 0 : index
    %11 = vector.load %arg4[%c0_5, %c0_6] : memref<8x128xf32, #tpu.memory_space<vmem>>, vector<8x128xf32>
    %12 = vector.shape_cast %11 : vector<8x128xf32> to vector<1x8x128xf32>
    %13 = vector.broadcast %10 : vector<1x8x128xf32> to vector<2x8x128xf32>
    %14 = arith.mulf %0, %13 : vector<2x8x128xf32>
    %15 = vector.broadcast %12 : vector<1x8x128xf32> to vector<2x8x128xf32>
    %16 = arith.mulf %8, %15 : vector<2x8x128xf32>
    %17 = arith.addf %14, %16 : vector<2x8x128xf32>
    %c0_7 = arith.constant 0 : index
    %c0_8 = arith.constant 0 : index
    %c0_9 = arith.constant 0 : index
    %18 = vector.load %arg5[%c0_7, %c0_8, %c0_9] : memref<2x8x128xf32, #tpu.memory_space<vmem>>, vector<2x8x128xf32>
    tpu.vector_store %arg5[%c0_7, %c0_8, %c0_9], %17 {strides = array<i32>} : memref<2x8x128xf32, #tpu.memory_space<vmem>>, vector<2x8x128xf32>,
    return
  }
  func.func @transform_0(%arg0: i32, %arg1: i32) -> (i32, i32, i32) {
    %c0_i32 = arith.constant 0 : i32
    %c0_i32_0 = arith.constant 0 : i32
    return %arg1, %arg0, %c0_i32 : i32, i32, i32
  }
  func.func @transform_1(%arg0: i32, %arg1: i32) -> (i32, i32) {
    %c0_i32 = arith.constant 0 : i32
    %c0_i32_0 = arith.constant 0 : i32
    return %arg0, %c0_i32 : i32, i32
  }
  func.func @transform_2(%arg0: i32, %arg1: i32) -> (i32, i32) {
    %c0_i32 = arith.constant 0 : i32
    %c0_i32_0 = arith.constant 0 : i32
    return %arg0, %c0_i32 : i32, i32
  }
  func.func @transform_3(%arg0: i32, %arg1: i32) -> (i32, i32, i32) {
    %c0_i32 = arith.constant 0 : i32
    %c0_i32_0 = arith.constant 0 : i32
    return %arg1, %arg0, %c0_i32 : i32, i32, i32
  }
}

</mosaic_0001>

<llo_original>
// kernel: tpu_custom_call.1
$region0: #{tpu_custom_call.1}
  #allocation0 [shape = 'u32[]', space=smem, size = 0x4, offset = 0x4, fixed_abs, tag = 'smem constant byte address 0x4 - core index']
  #allocation1 [shape = 'u32[144,128]{1,0:T(1,128)}', space=vmem, size = 0x12000, scoped, tag = 'internal scratch']
  %s0 = inlined_call_operand.hbm [shape: f32[2,8,128], index: 0, kind: input, shape index: {}]
  %s1 = inlined_call_operand.hbm [shape: f32[16,128], index: 1, kind: input, shape index: {}]
  %s2 = inlined_call_operand.hbm [shape: f32[16,128], index: 2, kind: input, shape index: {}]
  %s3 = inlined_call_operand.hbm [shape: f32[2,8,128], index: 3, kind: output, shape index: {}]
  %s4 = sld [smem:[#allocation0]]
  $region34: #{tpu_custom_call.1} parent=0
    _
  %s6 = ssub.s32 1, %s4
  %s7 = scalar_select 0, %s6, %s4
  $region1: #{tpu_custom_call.1} parent=0
    #allocation2 [shape = 'u8[8192]{0}', space=vmem, size = 0x2000, scoped, tag = 'input window, operand 0, single buffered']
    #allocation3 [shape = 's32[1]{0}', space=sflag, size = 0x4, scoped, tag = 'scoped memory for tpu_custom_call.1']
    #allocation4 [shape = 's32[1]{0}', space=sflag, size = 0x4, scoped, tag = 'scoped memory for tpu_custom_call.1']
    #allocation5 [shape = 'u8[4096]{0}', space=vmem, size = 0x1000, scoped, tag = 'input window, operand 1, single buffered']
    #allocation6 [shape = 's32[1]{0}', space=sflag, size = 0x4, scoped, tag = 'scoped memory for tpu_custom_call.1']
    #allocation7 [shape = 'u8[4096]{0}', space=vmem, size = 0x1000, scoped, tag = 'input window, operand 2, single buffered']
    #allocation8 [shape = 'u8[8192]{0}', space=vmem, size = 0x2000, scoped, tag = 'output window, operand 0, single buffered']
    %8 = vsyncpa [#allocation3], 0
    %9 = vsyncpa [#allocation6], 0
    %10 = vsyncpa [#allocation4], 0
    // Predicated region
    $region2: #{tpu_custom_call.1} parent=1 // pred_check
      _
    $region3: #{tpu_custom_call.1} parent=1 // pred_check_branch
      %12 = sbr.rel (0) target = $region5
    $region4: #{tpu_custom_call.1} parent=1 // pred_region
      %s14 = ssub.s32 256, 256
      %15 = vsyncadd [#allocation3], %s14
      %s16 = sshll.u32 [#allocation2], 4
      %s17 = int_to_ptr.vmem [resolvable:$true] %s16
      %22 = dma.hbm_to_vmem [thread:$0]  %s0, 256, %s17, [#allocation3], 128, 128, 8
    $region5: #{tpu_custom_call.1} parent=1 // pred_fallthru
      _
    // Predicated region
    $region6: #{tpu_custom_call.1} parent=1 // pred_check
      _
    $region7: #{tpu_custom_call.1} parent=1 // pred_check_branch
      %24 = sbr.rel (0) target = $region9
    $region8: #{tpu_custom_call.1} parent=1 // pred_region
      %s26 = ssub.s32 128, 128
      %27 = vsyncadd [#allocation6], %s26
      %s29 = sshll.u32 [#allocation5], 4
      %s30 = int_to_ptr.vmem [resolvable:$true] %s29
      %32 = dma.hbm_to_vmem [thread:$0]  %s1, 128, %s30, [#allocation6]
    $region9: #{tpu_custom_call.1} parent=1 // pred_fallthru
      _
    // Predicated region
    $region10: #{tpu_custom_call.1} parent=1 // pred_check
      _
    $region11: #{tpu_custom_call.1} parent=1 // pred_check_branch
      %34 = sbr.rel (0) target = $region13
    $region12: #{tpu_custom_call.1} parent=1 // pred_region
      %s36 = ssub.s32 128, 128
      %37 = vsyncadd [#allocation6], %s36
      %s39 = sshll.u32 [#allocation7], 4
      %s40 = int_to_ptr.vmem [resolvable:$true] %s39
      %42 = dma.hbm_to_vmem [thread:$0]  %s2, 128, %s40, [#allocation6]
    $region13: #{tpu_custom_call.1} parent=1 // pred_fallthru
      _
    // Predicated region
    $region14: #{tpu_custom_call.1} parent=1 // pred_check
      _
    $region15: #{tpu_custom_call.1} parent=1 // pred_check_branch
      %44 = sbr.rel (0) target = $region17
    $region16: #{tpu_custom_call.1} parent=1 // pred_region
      %45 = dma.done [#allocation3], 256
    $region17: #{tpu_custom_call.1} parent=1 // pred_fallthru
      _
    // Predicated region
    $region18: #{tpu_custom_call.1} parent=1 // pred_check
      _
    $region19: #{tpu_custom_call.1} parent=1 // pred_check_branch
      %47 = sbr.rel (0) target = $region21
    $region20: #{tpu_custom_call.1} parent=1 // pred_region
      %48 = dma.done [#allocation6], 128
    $region21: #{tpu_custom_call.1} parent=1 // pred_fallthru
      _
    // Predicated region
    $region22: #{tpu_custom_call.1} parent=1 // pred_check
      _
    $region23: #{tpu_custom_call.1} parent=1 // pred_check_branch
      %50 = sbr.rel (0) target = $region25
    $region24: #{tpu_custom_call.1} parent=1 // pred_region
      %51 = dma.done [#allocation6], 128
    $region25: #{tpu_custom_call.1} parent=1 // pred_fallthru
      _
    %v52 = vld [vmem:[#allocation2] sm:$0xff]
    %v53 = vld [vmem:[#allocation2 + $0x8] sm:$0xff]
    %54 = vrot.lane.b32.xlu0 %v52, 127
    %v55 = vpop.permute.xlu0 %54
    %56 = vrot.lane.b32.xlu0 %v53, 127
    %v57 = vpop.permute.xlu0 %56
    %58 = vrot.lane.b32.xlu0 %v52, 1
    %v59 = vpop.permute.xlu0 %58
    %60 = vrot.lane.b32.xlu0 %v53, 1
    %v61 = vpop.permute.xlu0 %60
    %v62 = vlaneseq
    %v63 = vand.u32 %v62, 127
    %v64 = vand.u32 %v63, 1
    %vm65 = vcmp.eq.s32.totalorder %v64, 0
    %v66 = vsel %vm65, %v55, %v59
    %v67 = vsel %vm65, %v57, %v61
    %v68 = vld [vmem:[#allocation5] sm:$0xff]
    %v69 = vld [vmem:[#allocation7] sm:$0xff]
    %v70 = vmul.f32 %v52, %v68
    %v71 = vmul.f32 %v53, %v68
    %v72 = vmul.f32 %v66, %v69
    %v73 = vmul.f32 %v67, %v69
    %v74 = vadd.f32 %v70, %v72
    %v75 = vadd.f32 %v71, %v73
    %76 = vst [vmem:[#allocation8] sm:$0xff] %v74
    %77 = vst [vmem:[#allocation8 + $0x8] sm:$0xff] %v75
    // Predicated region
    $region26: #{tpu_custom_call.1} parent=1 // pred_check
      _
    $region27: #{tpu_custom_call.1} parent=1 // pred_check_branch
      %79 = sbr.rel (0) target = $region29
    $region28: #{tpu_custom_call.1} parent=1 // pred_region
      %s81 = ssub.s32 256, 256
      %82 = vsyncadd [#allocation4], %s81
      %s83 = sshll.u32 [#allocation8], 4
      %s84 = int_to_ptr.vmem [resolvable:$true] %s83
      %89 = dma.vmem_to_hbm [thread:$0]  %s84, 256, %s3, [#allocation4], 128, 128, 8
    $region29: #{tpu_custom_call.1} parent=1 // pred_fallthru
      _
    // Predicated region
    $region30: #{tpu_custom_call.1} parent=1 // pred_check
      _
    $region31: #{tpu_custom_call.1} parent=1 // pred_check_branch
      %91 = sbr.rel (0) target = $region33
    $region32: #{tpu_custom_call.1} parent=1 // pred_region
      %92 = dma.done [#allocation4], 256
    $region33: #{tpu_custom_call.1} parent=1 // pred_fallthru
      _
    %93 = vsyncpa [#allocation3], 1
    %94 = vsyncpa [#allocation6], 1
    %95 = vsyncpa [#allocation4], 1

</llo_original>
